<compile_context>
chip_gen: v6e
topology: v6e:2x2x1
jax: 0.10.0
libtpu: 0.0.40
codegen_flags: <defaults>
</compile_context>

<pallas_src>
import jax
import jax.numpy as jnp
from jax.experimental import pallas as pl
from jax.experimental.pallas import tpu as pltpu


# --------------------------------------------------------------------------
# Kernel
# --------------------------------------------------------------------------
def _tanh_matmul_kernel(x_ref, w_ref, b_ref, o_ref, acc_ref):
    """One (tm, tn) output tile of tanh(x @ w + b), accumulated over K."""
    k = pl.program_id(2)

    @pl.when(k == 0)
    def _init():
        # Fold the bias into the accumulator init: replaces the zero-init
        # store and removes the epilogue broadcast+add per output tile.
        acc_ref[...] = jnp.broadcast_to(b_ref[...], acc_ref.shape)

    # bf16 operands on the MXU, f32 accumulation.
    acc_ref[...] += jnp.dot(
        x_ref[...], w_ref[...], preferred_element_type=jnp.float32
    )

    @pl.when(k == pl.num_programs(2) - 1)
    def _finalize():
        # Epilogue in f32 (v5e has no bf16 VPU/EUP); single store of the tile.
        o_ref[...] = jnp.tanh(acc_ref[...]).astype(o_ref.dtype)


# --------------------------------------------------------------------------
# Tiling helpers
# --------------------------------------------------------------------------
def _round_up(v, m):
    return (v + m - 1) // m * m


def _pad2d(a, rows, cols):
    r, c = a.shape
    if r == rows and c == cols:
        return a
    return jnp.pad(a, ((0, rows - r), (0, cols - c)))


def _pick_tile(dim, tile_max, align):
    """Largest tile <= tile_max (multiple of `align`) splitting `dim` into
    near-equal pieces — avoids nearly-doubling padding on awkward sizes."""
    d = _round_up(dim, align)
    if d <= tile_max:
        return d
    steps = -(-d // tile_max)              # ceil div
    return _round_up(-(-d // steps), align)


def _select_tile_budget():
    """Generation-aware tile caps + VMEM limit (keyed off VMEM capacity)."""
    vmem_bytes = 128 * 1024 * 1024
    try:
        info = pltpu.get_tpu_info()
        vmem_bytes = int(getattr(info, "vmem_capacity_bytes", vmem_bytes))
    except Exception:
        pass  # conservative fallback (treated as a 128 MiB-VMEM chip)
    if vmem_bytes <= 64 * 1024 * 1024:
        # v7x: 64 MiB VMEM per TensorCore, 2 TensorCores per chip.
        return dict(tm_max=512, tn_max=1024, tk_max=1024,
                    vmem_limit=48 * 1024 * 1024, two_core=True)
    # v5e / v6e: 128 MiB VMEM, single TensorCore.
    return dict(tm_max=1024, tn_max=2048, tk_max=1024,
                vmem_limit=64 * 1024 * 1024, two_core=False)


# --------------------------------------------------------------------------
# Synthetic black box with hoisted weight preprocessing
# --------------------------------------------------------------------------
class PallasTanhMatmulBlackBox:
    """Synthetic black box  y = tanh(x @ W + b)  as a Pallas TPU kernel.

    W and b are converted to their kernel layouts (bf16 / f32, lane-dense
    padded) once at construction; each call only casts/pads the activations
    and launches the tiled (M, N, K) kernel.
    """

    def __init__(self, w, b):
        d_in, d_out = w.shape
        assert b.shape == (1, d_out)
        self.d_in, self.d_out = d_in, d_out

        cfg = _select_tile_budget()
        self._tm_max = cfg["tm_max"]
        self._vmem_limit = cfg["vmem_limit"]

        tn = _pick_tile(d_out, cfg["tn_max"], 128)
        tk = _pick_tile(d_in, cfg["tk_max"], 128)

        # v7x megacore: if the whole output width fits in one N tile, split it
        # so both TensorCores get parallel work (M is also parallel, so large
        # batches cover remaining single-N-tile cases).
        if cfg["two_core"] and _round_up(d_out, 128) <= tn and tn % 256 == 0:
            tn //= 2

        self.tn, self.tk = tn, tk
        self.kp = _round_up(d_in, tk)
        self.np_ = _round_up(d_out, tn)

        # Hoisted: one-time cast + pad of W / b (not repeated per forward).
        self.w_p = _pad2d(w.astype(jnp.bfloat16), self.kp, self.np_)
        self.b_p = _pad2d(b.astype(jnp.float32), 1, self.np_)

    def __call__(self, x):
        batch, d_in = x.shape
        assert d_in == self.d_in

        tm = _pick_tile(batch, self._tm_max, 8)
        mp = _round_up(batch, tm)

        # Per-call activation prep: one cheap fused pass over x (cast + pad).
        x_p = _pad2d(x.astype(jnp.bfloat16), mp, self.kp)

        tn, tk = self.tn, self.tk
        grid = (mp // tm, self.np_ // tn, self.kp // tk)

        out_padded = pl.pallas_call(
            _tanh_matmul_kernel,
            out_shape=jax.ShapeDtypeStruct((mp, self.np_), jnp.float32),
            grid_spec=pltpu.PrefetchScalarGridSpec(
                num_scalar_prefetch=0,
                grid=grid,
                in_specs=[
                    pl.BlockSpec((tm, tk), lambda i, j, k: (i, k)),
                    pl.BlockSpec((tk, tn), lambda i, j, k: (k, j)),
                    pl.BlockSpec((1, tn), lambda i, j, k: (0, j)),
                ],
                out_specs=pl.BlockSpec((tm, tn), lambda i, j, k: (i, j)),
                scratch_shapes=[pltpu.VMEM((tm, tn), jnp.float32)],
            ),
            compiler_params=pltpu.CompilerParams(
                dimension_semantics=("parallel", "parallel", "arbitrary"),
                vmem_limit_bytes=self._vmem_limit,
            ),
        )(x_p, self.w_p, self.b_p)

        return out_padded[:batch, : self.d_out]


def _black_box_ref(x, w, b):
    """Pure-JAX reference with the same bf16-operand / f32-accum numerics."""
    acc = jnp.dot(
        x.astype(jnp.bfloat16),
        w.astype(jnp.bfloat16),
        preferred_element_type=jnp.float32,
    )
    return jnp.tanh(acc + b.astype(jnp.float32))


class BlackBoxLayer:
    """JAX analogue of the PyTorch BlackBoxLayer: forward(x) = black_box_fn(x)."""

    def __init__(self, black_box_fn):
        self.black_box_fn = black_box_fn

    def __call__(self, x):
        return self.black_box_fn(x)


# --------------------------------------------------------------------------
# Demo / correctness check
# --------------------------------------------------------------------------
if __name__ == "__main__":
    key = jax.random.PRNGKey(0)
    kx, kw, kb, kx2, kw2, kb2 = jax.random.split(key, 6)

    # --- Small shapes consistent with the emgrad contract -------------------
    batch, input_size, output_size = 8, 32, 32
    x = jax.random.normal(kx, (batch, input_size), dtype=jnp.float32)
    w = jax.random.normal(kw, (input_size, output_size), dtype=jnp.float32) * 0.1
    b = jax.random.normal(kb, (1, output_size), dtype=jnp.float32) * 0.1

    layer = BlackBoxLayer(PallasTanhMatmulBlackBox(w, b))
    y = jax.block_until_ready(layer(x))
    y_ref = _black_box_ref(x, w, b)
    assert y.shape == (batch, output_size)
    assert jnp.allclose(y, y_ref, atol=2e-3, rtol=2e-3)

    # --- Larger check that exercises the multi-K-step (accumulating) grid ---
    B2, Din2, Dout2 = 256, 2048, 512
    x2 = jax.random.normal(kx2, (B2, Din2), dtype=jnp.float32)
    w2 = jax.random.normal(kw2, (Din2, Dout2), dtype=jnp.float32) * 0.02
    b2 = jax.random.normal(kb2, (1, Dout2), dtype=jnp.float32) * 0.05

    bb2 = PallasTanhMatmulBlackBox(w2, b2)
    y2 = jax.block_until_ready(bb2(x2))
    y2_ref = _black_box_ref(x2, w2, b2)
    assert y2.shape == (B2, Dout2)
    assert jnp.allclose(y2, y2_ref, atol=2e-3, rtol=2e-3)

    # TODO(synk): EmgradWrapper.backward's finite-difference gradient
    # estimation is autograd machinery, not forward compute, and is
    # intentionally not ported.

    print("KERNEL_OK")
</pallas_src>

<mosaic_0001>
module attributes {stable_mosaic.version = 11 : i64} {
  func.func @_tanh_matmul_kernel(%arg0: i32, %arg1: i32, %arg2: i32, %arg3: memref<8x128xbf16, #tpu.memory_space<vmem>>, %arg4: memref<128x128xbf16, #tpu.memory_space<vmem>>, %arg5: memref<1x128xf32, #tpu.memory_space<vmem>>, %arg6: memref<8x128xf32, #tpu.memory_space<vmem>>, %arg7: memref<8x128xf32, #tpu.memory_space<vmem>>) attributes {dimension_semantics = [#tpu.dimension_semantics<parallel>, #tpu.dimension_semantics<parallel>, #tpu.dimension_semantics<arbitrary>], iteration_bounds = array<i64: 1, 1, 1>, scalar_prefetch = 0 : i64, scratch_operands = 1 : i64, tpu.core_type = #tpu.core_type<tc>, window_params = [{transform_indices = @transform_0, window_bounds = array<i64: 8, 128>}, {transform_indices = @transform_1, window_bounds = array<i64: 128, 128>}, {transform_indices = @transform_2, window_bounds = array<i64: 1, 128>}, {transform_indices = @transform_3, window_bounds = array<i64: 8, 128>}]} {
    %c0_i32 = arith.constant 0 : i32
    %0 = arith.cmpi eq, %arg2, %c0_i32 : i32
    %1 = arith.extui %0 : i1 to i32
    %c0_i32_0 = arith.constant 0 : i32
    %2 = arith.cmpi ne, %1, %c0_i32_0 : i32
    scf.if %2 {
      %c0_10 = arith.constant 0 : index
      %c0_11 = arith.constant 0 : index
      %12 = vector.load %arg5[%c0_10, %c0_11] : memref<1x128xf32, #tpu.memory_space<vmem>>, vector<1x128xf32>
      %13 = vector.shape_cast %12 : vector<1x128xf32> to vector<1x128xf32>
      %14 = vector.broadcast %13 : vector<1x128xf32> to vector<8x128xf32>
      %c0_12 = arith.constant 0 : index
      %c0_13 = arith.constant 0 : index
      %15 = vector.load %arg7[%c0_12, %c0_13] : memref<8x128xf32, #tpu.memory_space<vmem>>, vector<8x128xf32>
      tpu.vector_store %arg7[%c0_12, %c0_13], %14 {strides = array<i32>} : memref<8x128xf32, #tpu.memory_space<vmem>>, vector<8x128xf32>,
    } else {
    }
    %c0 = arith.constant 0 : index
    %c0_1 = arith.constant 0 : index
    %3 = vector.load %arg7[%c0, %c0_1] : memref<8x128xf32, #tpu.memory_space<vmem>>, vector<8x128xf32>
    %c0_2 = arith.constant 0 : index
    %c0_3 = arith.constant 0 : index
    %4 = vector.load %arg3[%c0_2, %c0_3] : memref<8x128xbf16, #tpu.memory_space<vmem>>, vector<8x128xbf16>
    %c0_4 = arith.constant 0 : index
    %c0_5 = arith.constant 0 : index
    %5 = vector.load %arg4[%c0_4, %c0_5] : memref<128x128xbf16, #tpu.memory_space<vmem>>, vector<128x128xbf16>
    %cst = arith.constant dense<0.000000e+00> : vector<8x128xf32>
    %6 = tpu.matmul %4, %5, %cst {dimension_numbers = #tpu.dot_dimension_numbers<[1], [0], [0], [1], [0, 0, 1, 1], [], []>} : vector<8x128xbf16>, vector<128x128xbf16>, vector<8x128xf32> -> vector<8x128xf32>
    %7 = arith.addf %3, %6 : vector<8x128xf32>
    %c0_6 = arith.constant 0 : index
    %c0_7 = arith.constant 0 : index
    %8 = vector.load %arg7[%c0_6, %c0_7] : memref<8x128xf32, #tpu.memory_space<vmem>>, vector<8x128xf32>
    tpu.vector_store %arg7[%c0_6, %c0_7], %7 {strides = array<i32>} : memref<8x128xf32, #tpu.memory_space<vmem>>, vector<8x128xf32>,
    %c0_i32_8 = arith.constant 0 : i32
    %9 = arith.cmpi eq, %arg2, %c0_i32_8 : i32
    %10 = arith.extui %9 : i1 to i32
    %c0_i32_9 = arith.constant 0 : i32
    %11 = arith.cmpi ne, %10, %c0_i32_9 : i32
    scf.if %11 {
      %c0_10 = arith.constant 0 : index
      %c0_11 = arith.constant 0 : index
      %12 = vector.load %arg7[%c0_10, %c0_11] : memref<8x128xf32, #tpu.memory_space<vmem>>, vector<8x128xf32>
      %13 = math.tanh %12 : vector<8x128xf32>
      %c0_12 = arith.constant 0 : index
      %c0_13 = arith.constant 0 : index
      %14 = vector.load %arg6[%c0_12, %c0_13] : memref<8x128xf32, #tpu.memory_space<vmem>>, vector<8x128xf32>
      tpu.vector_store %arg6[%c0_12, %c0_13], %13 {strides = array<i32>} : memref<8x128xf32, #tpu.memory_space<vmem>>, vector<8x128xf32>,
    } else {
    }
    return
  }
  func.func @transform_0(%arg0: i32, %arg1: i32, %arg2: i32) -> (i32, i32) {
    %c0_i32 = arith.constant 0 : i32
    return %arg0, %arg2 : i32, i32
  }
  func.func @transform_1(%arg0: i32, %arg1: i32, %arg2: i32) -> (i32, i32) {
    %c0_i32 = arith.constant 0 : i32
    return %arg2, %arg1 : i32, i32
  }
  func.func @transform_2(%arg0: i32, %arg1: i32, %arg2: i32) -> (i32, i32) {
    %c0_i32 = arith.constant 0 : i32
    %c0_i32_0 = arith.constant 0 : i32
    return %c0_i32, %arg1 : i32, i32
  }
  func.func @transform_3(%arg0: i32, %arg1: i32, %arg2: i32) -> (i32, i32) {
    %c0_i32 = arith.constant 0 : i32
    return %arg0, %arg1 : i32, i32
  }
}

</mosaic_0001>

<llo_original>
// kernel: tpu_custom_call.1
$region0: #{tpu_custom_call.1}
  #allocation0 [shape = 'u32[]', space=smem, size = 0x4, offset = 0x4, fixed_abs, tag = 'smem constant byte address 0x4 - core index']
  #allocation1 [shape = 'u32[144,128]{1,0:T(1,128)}', space=vmem, size = 0x12000, scoped, tag = 'internal scratch']
  #allocation2 [shape = 'f32[8,128]{1,0:T(8,128)}', space=vmem, size = 0x1000, scoped, tag = 'scratch operand']
  %s0 = inlined_call_operand.hbm [shape: bf16[8,128], index: 0, kind: input, shape index: {}]
  %s1 = inlined_call_operand.hbm [shape: bf16[128,128], index: 1, kind: input, shape index: {}]
  %s2 = inlined_call_operand.vmem [shape: f32[1,128], index: 2, kind: input, shape index: {}]
  %s3 = inlined_call_operand.hbm [shape: f32[8,128], index: 3, kind: output, shape index: {}]
  %s4 = sld [smem:[#allocation0]]
  $region38: #{tpu_custom_call.1} parent=0
    _
  %s6 = ssub.s32 1, %s4
  %s7 = scalar_select 0, %s6, %s4
  $region1: #{tpu_custom_call.1} parent=0
    #allocation3 [shape = 'u8[2048]{0}', space=vmem, size = 0x800, scoped, tag = 'input window, operand 0, single buffered']
    #allocation4 [shape = 's32[1]{0}', space=sflag, size = 0x4, scoped, tag = 'scoped memory for tpu_custom_call.1']
    #allocation5 [shape = 's32[1]{0}', space=sflag, size = 0x4, scoped, tag = 'scoped memory for tpu_custom_call.1']
    #allocation6 [shape = 'u8[32768]{0}', space=vmem, size = 0x8000, scoped, tag = 'input window, operand 1, single buffered']
    #allocation7 [shape = 's32[1]{0}', space=sflag, size = 0x4, scoped, tag = 'scoped memory for tpu_custom_call.1']
    #allocation8 [shape = 'u8[4096]{0}', space=vmem, size = 0x1000, scoped, tag = 'output window, operand 0, single buffered']
    %8 = vsyncpa [#allocation4], 0
    %9 = vsyncpa [#allocation7], 0
    %10 = vsyncpa [#allocation5], 0
    // Predicated region
    $region2: #{tpu_custom_call.1} parent=1 // pred_check
      _
    $region3: #{tpu_custom_call.1} parent=1 // pred_check_branch
      %12 = sbr.rel (0) target = $region5
    $region4: #{tpu_custom_call.1} parent=1 // pred_region
      %s14 = ssub.s32 64, 64
      %15 = vsyncadd [#allocation4], %s14
      %s17 = sshll.u32 [#allocation3], 4
      %s18 = int_to_ptr.vmem [resolvable:$true] %s17
      %20 = dma.hbm_to_vmem [thread:$0]  %s0, 64, %s18, [#allocation4]
    $region5: #{tpu_custom_call.1} parent=1 // pred_fallthru
      _
    // Predicated region
    $region6: #{tpu_custom_call.1} parent=1 // pred_check
      _
    $region7: #{tpu_custom_call.1} parent=1 // pred_check_branch
      %22 = sbr.rel (0) target = $region9
    $region8: #{tpu_custom_call.1} parent=1 // pred_region
      %s24 = ssub.s32 1024, 1024
      %25 = vsyncadd [#allocation7], %s24
      %s26 = sshll.u32 [#allocation6], 4
      %s27 = int_to_ptr.vmem [resolvable:$true] %s26
      %32 = dma.hbm_to_vmem [thread:$0]  %s1, 1024, %s27, [#allocation7], 64, 64, 4
    $region9: #{tpu_custom_call.1} parent=1 // pred_fallthru
      _
    // Predicated region
    $region10: #{tpu_custom_call.1} parent=1 // pred_check
      _
    $region11: #{tpu_custom_call.1} parent=1 // pred_check_branch
      %34 = sbr.rel (0) target = $region13
    $region12: #{tpu_custom_call.1} parent=1 // pred_region
      _
    $region13: #{tpu_custom_call.1} parent=1 // pred_fallthru
      _
    // Predicated region
    $region14: #{tpu_custom_call.1} parent=1 // pred_check
      _
    $region15: #{tpu_custom_call.1} parent=1 // pred_check_branch
      %36 = sbr.rel (0) target = $region17
    $region16: #{tpu_custom_call.1} parent=1 // pred_region
      %37 = dma.done [#allocation4], 64
    $region17: #{tpu_custom_call.1} parent=1 // pred_fallthru
      _
    // Predicated region
    $region18: #{tpu_custom_call.1} parent=1 // pred_check
      _
    $region19: #{tpu_custom_call.1} parent=1 // pred_check_branch
      %39 = sbr.rel (0) target = $region21
    $region20: #{tpu_custom_call.1} parent=1 // pred_region
      %40 = dma.done [#allocation7], 1024
    $region21: #{tpu_custom_call.1} parent=1 // pred_fallthru
      _
    %p42 = scmp.eq.s32.totalorder 0, 0
    // Predicated region
    $region22: #{tpu_custom_call.1} parent=1 // pred_check
      %p43 = pneg %p42
    $region23: #{tpu_custom_call.1} parent=1 // pred_check_branch
      %45 = sbr.rel (%p43) target = $region25
    $region24: #{tpu_custom_call.1} parent=1 // pred_region
      %v46 = vld [vmem:[%s2] sm:$0x1]
      %v48 = vlaneseq
      %v49 = vshrl.u32 %v48, 7
      %v50 = vsub.s32 0, %v49
      %v51 = vrot.slane %v46, %v50
      %53 = vst [vmem:[#allocation2] sm:$0xff] %v51
    $region25: #{tpu_custom_call.1} parent=1 // pred_fallthru
      _
    %v54 = vld [vmem:[#allocation2] sm:$0xff]
    %v55 = vld [vmem:[#allocation3] sm:$0xf]
    %v56 = vld [vmem:[#allocation6] sm:$0xf]
    %v57 = vld [vmem:[#allocation6 + $0x4] sm:$0xf]
    %v58 = vld [vmem:[#allocation6 + $0x8] sm:$0xf]
    %v59 = vld [vmem:[#allocation6 + $0xc] sm:$0xf]
    %v60 = vld [vmem:[#allocation6 + $0x10] sm:$0xf]
    %v61 = vld [vmem:[#allocation6 + $0x14] sm:$0xf]
    %v62 = vld [vmem:[#allocation6 + $0x18] sm:$0xf]
    %v63 = vld [vmem:[#allocation6 + $0x1c] sm:$0xf]
    %v64 = vld [vmem:[#allocation6 + $0x20] sm:$0xf]
    %v65 = vld [vmem:[#allocation6 + $0x24] sm:$0xf]
    %v66 = vld [vmem:[#allocation6 + $0x28] sm:$0xf]
    %v67 = vld [vmem:[#allocation6 + $0x2c] sm:$0xf]
    %v68 = vld [vmem:[#allocation6 + $0x30] sm:$0xf]
    %v69 = vld [vmem:[#allocation6 + $0x34] sm:$0xf]
    %v70 = vld [vmem:[#allocation6 + $0x38] sm:$0xf]
    %v71 = vld [vmem:[#allocation6 + $0x3c] sm:$0xf]
    %v88 = vunpack.c.l.b16 %v56
    %v89 = vunpack.c.l.b16 %v57
    %v90 = vunpack.c.l.b16 %v58
    %v91 = vunpack.c.l.b16 %v59
    %v92 = vunpack.c.l.b16 %v60
    %v93 = vunpack.c.l.b16 %v61
    %v94 = vunpack.c.l.b16 %v62
    %v95 = vunpack.c.l.b16 %v63
    %v96 = vunpack.c.l.b16 %v64
    %v97 = vunpack.c.l.b16 %v65
    %v98 = vunpack.c.l.b16 %v66
    %v99 = vunpack.c.l.b16 %v67
    %v100 = vunpack.c.l.b16 %v68
    %v101 = vunpack.c.l.b16 %v69
    %v102 = vunpack.c.l.b16 %v70
    %v103 = vunpack.c.l.b16 %v71
    %v104 = vpack.c.b16 %v89, %v88
    %v105 = vpack.c.b16 %v91, %v90
    %v106 = vpack.c.b16 %v93, %v92
    %v107 = vpack.c.b16 %v95, %v94
    %v108 = vpack.c.b16 %v97, %v96
    %v109 = vpack.c.b16 %v99, %v98
    %v110 = vpack.c.b16 %v101, %v100
    %v111 = vpack.c.b16 %v103, %v102
    %120 = vmatprep.subr.bf16.mxu0 0
    %121 = vmatpush1.bf16.msra.mxu0 %v111
    %122 = vmatprep.subr.bf16.mxu0 0
    %123 = vmatpush1.bf16.msra.mxu0 %v110
    %124 = vmatprep.subr.bf16.mxu0 0
    %125 = vmatpush1.bf16.msra.mxu0 %v109
    %126 = vmatprep.subr.bf16.mxu0 0
    %127 = vmatpush1.bf16.msra.mxu0 %v108
    %128 = vmatprep.subr.bf16.mxu0 0
    %129 = vmatpush1.bf16.msra.mxu0 %v107
    %130 = vmatprep.subr.bf16.mxu0 0
    %131 = vmatpush1.bf16.msra.mxu0 %v106
    %132 = vmatprep.subr.bf16.mxu0 0
    %133 = vmatpush1.bf16.msra.mxu0 %v105
    %134 = vmatprep.subr.bf16.mxu0 0
    %135 = vmatpush1.bf16.msra.mxu0 %v104
    %136 = vmatprep.subr.bf16.mxu0 0
    %137 = vmatpush2.bf16.msra.mxu0 0
    %138 = vmatprep.subr.bf16.mxu0 0
    %139 = vmatpush2.bf16.msra.mxu0 0
    %140 = vmatprep.subr.bf16.mxu0 0
    %141 = vmatpush2.bf16.msra.mxu0 0
    %142 = vmatprep.subr.bf16.mxu0 0
    %143 = vmatpush2.bf16.msra.mxu0 0
    %144 = vmatprep.subr.bf16.mxu0 0
    %145 = vmatpush2.bf16.msra.mxu0 0
    %146 = vmatprep.subr.bf16.mxu0 0
    %147 = vmatpush2.bf16.msra.mxu0 0
    %148 = vmatprep.subr.bf16.mxu0 0
    %149 = vmatpush2.bf16.msra.mxu0 0
    %150 = vmatprep.subr.bf16.mxu0 0
    %151 = vmatpush2.bf16.msra.mxu0 0
    %152 = vmatprep.mubr.bf16.mxu0 0
    %153 = vmatmul.mubr.bf16.gmra.mxu0 %v55
    %v154 = vpop.f32.mrf.mxu0
    %v155 = vadd.f32 0.0, %v154
    %v156 = vpop.f32.mrf.mxu0
    %v157 = vpop.f32.mrf.mxu0
    %v158 = vpop.f32.mrf.mxu0
    %159 = vdwg.mxu0
    %v160 = vadd.f32 %v54, %v155
    %161 = vst [vmem:[#allocation2] sm:$0xff] %v160
    // Predicated region
    $region26: #{tpu_custom_call.1} parent=1 // pred_check
      %p162 = pneg %p42
    $region27: #{tpu_custom_call.1} parent=1 // pred_check_branch
      %164 = sbr.rel (%p162) target = $region29
    $region28: #{tpu_custom_call.1} parent=1 // pred_region
      %v165 = vld [vmem:[#allocation2] sm:$0xff]
      %v166 = vtanh.pop %v165
      %167 = vst [vmem:[#allocation8] sm:$0xff] %v166
    $region29: #{tpu_custom_call.1} parent=1 // pred_fallthru
      _
    // Predicated region
    $region30: #{tpu_custom_call.1} parent=1 // pred_check
      _
    $region31: #{tpu_custom_call.1} parent=1 // pred_check_branch
      %169 = sbr.rel (0) target = $region33
    $region32: #{tpu_custom_call.1} parent=1 // pred_region
      %s171 = ssub.s32 128, 128
      %172 = vsyncadd [#allocation5], %s171
      %s174 = sshll.u32 [#allocation8], 4
      %s175 = int_to_ptr.vmem [resolvable:$true] %s174
      %177 = dma.vmem_to_hbm [thread:$0]  %s175, 128, %s3, [#allocation5]
    $region33: #{tpu_custom_call.1} parent=1 // pred_fallthru
      _
    // Predicated region
    $region34: #{tpu_custom_call.1} parent=1 // pred_check
      _
    $region35: #{tpu_custom_call.1} parent=1 // pred_check_branch
      %179 = sbr.rel (0) target = $region37
    $region36: #{tpu_custom_call.1} parent=1 // pred_region
      %180 = dma.done [#allocation5], 128
    $region37: #{tpu_custom_call.1} parent=1 // pred_fallthru
      _
    %181 = vsyncpa [#allocation4], 1
    %182 = vsyncpa [#allocation7], 1
    %183 = vsyncpa [#allocation5], 1

</llo_original>
